<compile_context>
chip_gen: v5e
topology: v5e:2x2
jax: 0.10.0
libtpu: 0.0.40
codegen_flags: <defaults>
</compile_context>

<pallas_src>
import functools

import jax
import jax.numpy as jnp
from jax.experimental import pallas as pl
from jax.experimental.pallas import tpu as pltpu


def _fd_loss_kernel(src_ref, tgt_ref, out_ref, acc_ref, *, rows, tr, steps):
    c = pl.program_id(0)           # parallel chunk index
    i = pl.program_id(1)           # reduction step within the chunk
    gb = c * steps + i             # unclamped global row-block index

    # (Re)initialize the per-core accumulator at the start of each chunk.
    @pl.when(i == 0)
    def _init():
        acc_ref[...] = jnp.zeros_like(acc_ref)

    s = src_ref[...].astype(jnp.float32)
    t = tgt_ref[...].astype(jnp.float32)
    both_neg = jnp.logical_and(t < 0.0, s < 0.0)
    # err = fdr - t, with fdr = (t - s) normally and (s - t) when both are negative.
    err = jnp.where(both_neg, s - 2.0 * t, -s)
    err2 = err * err

    block_is_full = (gb + 1) * tr <= rows

    @pl.when(block_is_full)
    def _accumulate():
        acc_ref[...] += err2

    @pl.when(jnp.logical_not(block_is_full))
    def _accumulate_masked():
        # Ragged tail (and fully out-of-range steps of the last chunk): zero rows >= rows.
        local_row = jax.lax.broadcasted_iota(jnp.int32, err2.shape, 0)
        valid = (gb * tr + local_row) < rows
        acc_ref[...] += jnp.where(valid, err2, 0.0)

    # Finalize: fold the (tr, 128) accumulator to a single vreg-shaped partial per chunk.
    @pl.when(i == pl.num_programs(1) - 1)
    def _finalize():
        folded = acc_ref[...].reshape(tr // 8, 8, 128)
        out_ref[...] = jnp.sum(folded, axis=0, keepdims=True)


def fd_loss(source, target):
    """Pallas TPU implementation of FDLoss.forward(source, target)."""
    src = source.reshape(-1)
    tgt = target.reshape(-1)
    n = src.shape[0]

    lane = 128
    rem = n % lane
    if rem:
        # Rare ragged case only: minimal zero pad to the next lane multiple.
        # Zero padding contributes exactly 0 (s = t = 0 -> err = 0).
        pad = lane - rem
        src = jnp.pad(src, (0, pad))
        tgt = jnp.pad(tgt, (0, pad))
    rows = src.shape[0] // lane
    src = src.reshape(rows, lane)
    tgt = tgt.reshape(rows, lane)

    # Row-tile size: ~0.5 MiB of f32 per input tile; multiple of 16 sublanes so the
    # same tiling also works for bf16 inputs. With double buffering this is
    # 2 inputs x 2 buffers x tile + (tr,128) accumulator << scoped VMEM on v5e/v6e/v7x.
    tr_max = 1024
    tr = min(tr_max, ((rows + 15) // 16) * 16)
    total_blocks = pl.cdiv(rows, tr)

    nc = 2                                   # leading "parallel" axis -> both TCs on v7x
    steps = pl.cdiv(total_blocks, nc)

    def block_map(c, i):
        # Clamp so the index_map never points at a fully out-of-range block; the kernel
        # masks such steps to zero using the *unclamped* index.
        return (jnp.minimum(c * steps + i, total_blocks - 1), 0)

    kernel = functools.partial(_fd_loss_kernel, rows=rows, tr=tr, steps=steps)

    partials = pl.pallas_call(
        kernel,
        out_shape=jax.ShapeDtypeStruct((nc, 8, 128), jnp.float32),
        grid=(nc, steps),
        in_specs=[
            pl.BlockSpec((tr, lane), block_map),
            pl.BlockSpec((tr, lane), block_map),
        ],
        out_specs=pl.BlockSpec((1, 8, 128), lambda c, i: (c, 0, 0)),
        scratch_shapes=[pltpu.VMEM((tr, lane), jnp.float32)],
        compiler_params=pltpu.CompilerParams(
            dimension_semantics=("parallel", "arbitrary")),
    )(src, tgt)

    # Tiny final reduction (2*8*128 partials) + mean over the true element count.
    return jnp.sum(partials) / jnp.float32(n)


def _fd_loss_reference(source, target):
    s = source.reshape(-1).astype(jnp.float32)
    t = target.reshape(-1).astype(jnp.float32)
    diff = t - s
    fdr = jnp.where(jnp.logical_and(t < 0.0, s < 0.0), -diff, diff)
    return jnp.mean((fdr - t) ** 2)


if __name__ == "__main__":
    key = jax.random.PRNGKey(0)
    k1, k2 = jax.random.split(key)
    # Small NCHW-shaped feature tensors (batch=2, channels=4, spatial=16x16).
    source = jax.random.normal(k1, (2, 4, 16, 16), dtype=jnp.float32)
    target = jax.random.normal(k2, (2, 4, 16, 16), dtype=jnp.float32)

    loss = fd_loss(source, target)
    jax.block_until_ready(loss)

    ref = _fd_loss_reference(source, target)
    assert jnp.allclose(loss, ref, rtol=1e-5, atol=1e-5), (loss, ref)
    print("KERNEL_OK")
</pallas_src>

<mosaic_0001>
module attributes {stable_mosaic.version = 11 : i64} {
  func.func @_fd_loss_kernel(%arg0: i32, %arg1: i32, %arg2: memref<16x128xf32, #tpu.memory_space<vmem>>, %arg3: memref<16x128xf32, #tpu.memory_space<vmem>>, %arg4: memref<1x8x128xf32, #tpu.memory_space<vmem>>, %arg5: memref<16x128xf32, #tpu.memory_space<vmem>>) attributes {dimension_semantics = [#tpu.dimension_semantics<parallel>, #tpu.dimension_semantics<arbitrary>], iteration_bounds = array<i64: 2, 1>, scalar_prefetch = 0 : i64, scratch_operands = 1 : i64, tpu.core_type = #tpu.core_type<tc>, window_params = [{transform_indices = @transform_0, window_bounds = array<i64: 16, 128>}, {transform_indices = @transform_1, window_bounds = array<i64: 16, 128>}, {transform_indices = @transform_2, window_bounds = array<i64: 1, 8, 128>}]} {
    %c1_i32 = arith.constant 1 : i32
    %0 = arith.muli %arg0, %c1_i32 : i32
    %1 = arith.addi %0, %arg1 : i32
    %c0_i32 = arith.constant 0 : i32
    %2 = arith.cmpi eq, %arg1, %c0_i32 : i32
    %3 = arith.extui %2 : i1 to i32
    %c0_i32_0 = arith.constant 0 : i32
    %4 = arith.cmpi ne, %3, %c0_i32_0 : i32
    scf.if %4 {
      %cst_13 = arith.constant 0.000000e+00 : f32
      %30 = vector.broadcast %cst_13 : f32 to vector<16x128xf32>
      %c0_14 = arith.constant 0 : index
      %c0_15 = arith.constant 0 : index
      %31 = vector.load %arg5[%c0_14, %c0_15] : memref<16x128xf32, #tpu.memory_space<vmem>>, vector<16x128xf32>
      tpu.vector_store %arg5[%c0_14, %c0_15], %30 {strides = array<i32>} : memref<16x128xf32, #tpu.memory_space<vmem>>, vector<16x128xf32>,
    } else {
    }
    %c0 = arith.constant 0 : index
    %c0_1 = arith.constant 0 : index
    %5 = vector.load %arg2[%c0, %c0_1] : memref<16x128xf32, #tpu.memory_space<vmem>>, vector<16x128xf32>
    %c0_2 = arith.constant 0 : index
    %c0_3 = arith.constant 0 : index
    %6 = vector.load %arg3[%c0_2, %c0_3] : memref<16x128xf32, #tpu.memory_space<vmem>>, vector<16x128xf32>
    %cst = arith.constant 0.000000e+00 : f32
    %7 = vector.broadcast %cst : f32 to vector<16x128xf32>
    %8 = arith.cmpf olt, %6, %7 : vector<16x128xf32>
    %cst_4 = arith.constant 0.000000e+00 : f32
    %9 = vector.broadcast %cst_4 : f32 to vector<16x128xf32>
    %10 = arith.cmpf olt, %5, %9 : vector<16x128xf32>
    %11 = arith.andi %8, %10 : vector<16x128xi1>
    %cst_5 = arith.constant 2.000000e+00 : f32
    %12 = vector.broadcast %cst_5 : f32 to vector<16x128xf32>
    %13 = arith.mulf %12, %6 : vector<16x128xf32>
    %14 = arith.subf %5, %13 : vector<16x128xf32>
    %cst_6 = arith.constant 0.000000e+00 : f32
    %15 = vector.broadcast %cst_6 : f32 to vector<16x128xf32>
    %16 = arith.subf %15, %5 : vector<16x128xf32>
    %17 = arith.select %11, %14, %16 : vector<16x128xi1>, vector<16x128xf32>
    %18 = arith.mulf %17, %17 : vector<16x128xf32>
    %c1_i32_7 = arith.constant 1 : i32
    %19 = arith.addi %1, %c1_i32_7 : i32
    %c16_i32 = arith.constant 16 : i32
    %20 = arith.muli %19, %c16_i32 : i32
    %c16_i32_8 = arith.constant 16 : i32
    %21 = arith.cmpi sle, %20, %c16_i32_8 : i32
    %22 = arith.extui %21 : i1 to i32
    %c0_i32_9 = arith.constant 0 : i32
    %23 = arith.cmpi ne, %22, %c0_i32_9 : i32
    scf.if %23 {
      %c0_13 = arith.constant 0 : index
      %c0_14 = arith.constant 0 : index
      %30 = vector.load %arg5[%c0_13, %c0_14] : memref<16x128xf32, #tpu.memory_space<vmem>>, vector<16x128xf32>
      %31 = arith.addf %30, %18 : vector<16x128xf32>
      %c0_15 = arith.constant 0 : index
      %c0_16 = arith.constant 0 : index
      %32 = vector.load %arg5[%c0_15, %c0_16] : memref<16x128xf32, #tpu.memory_space<vmem>>, vector<16x128xf32>
      tpu.vector_store %arg5[%c0_15, %c0_16], %31 {strides = array<i32>} : memref<16x128xf32, #tpu.memory_space<vmem>>, vector<16x128xf32>,
    } else {
    }
    %true = arith.constant true
    %24 = arith.xori %21, %true : i1
    %25 = arith.extui %24 : i1 to i32
    %c0_i32_10 = arith.constant 0 : i32
    %26 = arith.cmpi ne, %25, %c0_i32_10 : i32
    scf.if %26 {
      %30 = tpu.iota {dimensions = array<i32: 0>} : vector<16x128xi32>
      %c16_i32_13 = arith.constant 16 : i32
      %31 = arith.muli %1, %c16_i32_13 : i32
      %32 = vector.broadcast %31 : i32 to vector<16x128xi32>
      %33 = arith.addi %32, %30 : vector<16x128xi32>
      %c16_i32_14 = arith.constant 16 : i32
      %34 = vector.broadcast %c16_i32_14 : i32 to vector<16x128xi32>
      %35 = arith.cmpi slt, %33, %34 : vector<16x128xi32>
      %c0_15 = arith.constant 0 : index
      %c0_16 = arith.constant 0 : index
      %36 = vector.load %arg5[%c0_15, %c0_16] : memref<16x128xf32, #tpu.memory_space<vmem>>, vector<16x128xf32>
      %cst_17 = arith.constant 0.000000e+00 : f32
      %37 = vector.broadcast %cst_17 : f32 to vector<16x128xf32>
      %38 = arith.select %35, %18, %37 : vector<16x128xi1>, vector<16x128xf32>
      %39 = arith.addf %36, %38 : vector<16x128xf32>
      %c0_18 = arith.constant 0 : index
      %c0_19 = arith.constant 0 : index
      %40 = vector.load %arg5[%c0_18, %c0_19] : memref<16x128xf32, #tpu.memory_space<vmem>>, vector<16x128xf32>
      tpu.vector_store %arg5[%c0_18, %c0_19], %39 {strides = array<i32>} : memref<16x128xf32, #tpu.memory_space<vmem>>, vector<16x128xf32>,
    } else {
    }
    %c0_i32_11 = arith.constant 0 : i32
    %27 = arith.cmpi eq, %arg1, %c0_i32_11 : i32
    %28 = arith.extui %27 : i1 to i32
    %c0_i32_12 = arith.constant 0 : i32
    %29 = arith.cmpi ne, %28, %c0_i32_12 : i32
    scf.if %29 {
      %c0_13 = arith.constant 0 : index
      %c0_14 = arith.constant 0 : index
      %30 = vector.load %arg5[%c0_13, %c0_14] : memref<16x128xf32, #tpu.memory_space<vmem>>, vector<16x128xf32>
      %31 = vector.shape_cast %30 : vector<16x128xf32> to vector<2x8x128xf32>
      %cst_15 = arith.constant dense<0.000000e+00> : vector<8x128xf32>
      %32 = vector.multi_reduction <add>, %31, %cst_15 [0] : vector<2x8x128xf32> to vector<8x128xf32>
      %33 = vector.shape_cast %32 : vector<8x128xf32> to vector<1x8x128xf32>
      %c0_16 = arith.constant 0 : index
      %c0_17 = arith.constant 0 : index
      %c0_18 = arith.constant 0 : index
      %34 = vector.load %arg4[%c0_16, %c0_17, %c0_18] : memref<1x8x128xf32, #tpu.memory_space<vmem>>, vector<1x8x128xf32>
      tpu.vector_store %arg4[%c0_16, %c0_17, %c0_18], %33 {strides = array<i32>} : memref<1x8x128xf32, #tpu.memory_space<vmem>>, vector<1x8x128xf32>,
    } else {
    }
    return
  }
  func.func @transform_0(%arg0: i32, %arg1: i32) -> (i32, i32) {
    %c1_i32 = arith.constant 1 : i32
    %0 = arith.muli %arg0, %c1_i32 : i32
    %1 = arith.addi %0, %arg1 : i32
    %c0_i32 = arith.constant 0 : i32
    %2 = arith.minsi %1, %c0_i32 : i32
    %c0_i32_0 = arith.constant 0 : i32
    %c0_i32_1 = arith.constant 0 : i32
    return %2, %c0_i32_0 : i32, i32
  }
  func.func @transform_1(%arg0: i32, %arg1: i32) -> (i32, i32) {
    %c1_i32 = arith.constant 1 : i32
    %0 = arith.muli %arg0, %c1_i32 : i32
    %1 = arith.addi %0, %arg1 : i32
    %c0_i32 = arith.constant 0 : i32
    %2 = arith.minsi %1, %c0_i32 : i32
    %c0_i32_0 = arith.constant 0 : i32
    %c0_i32_1 = arith.constant 0 : i32
    return %2, %c0_i32_0 : i32, i32
  }
  func.func @transform_2(%arg0: i32, %arg1: i32) -> (i32, i32, i32) {
    %c0_i32 = arith.constant 0 : i32
    %c0_i32_0 = arith.constant 0 : i32
    %c0_i32_1 = arith.constant 0 : i32
    return %arg0, %c0_i32, %c0_i32_0 : i32, i32, i32
  }
}

</mosaic_0001>

<llo_original>
// kernel: tpu_custom_call.1
$region0: #{tpu_custom_call.1}
  #allocation0 [shape = 'u32[]', space=smem, size = 0x4, offset = 0x4, fixed_abs, tag = 'smem constant byte address 0x4 - core index']
  #allocation1 [shape = 'u32[72,128]{1,0:T(1,128)}', space=vmem, size = 0x9000, scoped, tag = 'internal scratch']
  #allocation2 [shape = 'f32[16,128]{1,0:T(8,128)}', space=vmem, size = 0x2000, scoped, tag = 'scratch operand']
  %s0 = inlined_call_operand.hbm [shape: f32[16,128], index: 0, kind: input, shape index: {}]
  %s1 = inlined_call_operand.hbm [shape: f32[16,128], index: 1, kind: input, shape index: {}]
  %s2 = inlined_call_operand.hbm [shape: f32[2,8,128], index: 2, kind: output, shape index: {}]
  %s3 = sld [smem:[#allocation0]]
  $region65: #{tpu_custom_call.1} parent=0
    _
  %s5 = ssub.s32 1, %s3
  %s6 = scalar_select 0, %s5, %s3
  $region1: #{tpu_custom_call.1} parent=0
    #allocation3 [shape = 'u8[16384]{0}', space=vmem, size = 0x4000, scoped, tag = 'input window, operand 0']
    #allocation4 [shape = 's32[2]{0}', space=sflag, size = 0x8, scoped, tag = 'scoped memory for tpu_custom_call.1']
    #allocation5 [shape = 's32[2]{0}', space=sflag, size = 0x8, scoped, tag = 'scoped memory for tpu_custom_call.1']
    #allocation6 [shape = 'u8[16384]{0}', space=vmem, size = 0x4000, scoped, tag = 'input window, operand 1']
    #allocation7 [shape = 's32[2]{0}', space=sflag, size = 0x8, scoped, tag = 'scoped memory for tpu_custom_call.1']
    #allocation8 [shape = 'u8[8192]{0}', space=vmem, size = 0x2000, scoped, tag = 'output window, operand 0']
    %7 = vsyncpa [#allocation4], 0
    %s8 = scalar_lea.sflag [#allocation4], 1
    %9 = vsyncpa %s8, 0
    %10 = vsyncpa [#allocation7], 0
    %s11 = scalar_lea.sflag [#allocation7], 1
    %12 = vsyncpa %s11, 0
    %13 = vsyncpa [#allocation5], 0
    %s14 = scalar_lea.sflag [#allocation5], 1
    %15 = vsyncpa %s14, 0
    loop: start=0, step=1, limit=4
    $region2: #{tpu_custom_call.1} parent=1 // loop_pre_header
      _
    $region3: #{tpu_custom_call.1} parent=1 // loop_header
      %s17 = sphi 0, %s21
      %p18 = scmp.ge.s32.totalorder %s17, 4
      %s24 = sphi 0, %s36
      %s25 = sphi 0, %s32
      %s26 = sphi 0, %s24
      %s27 = sphi 0, %s25
      %s28 = sphi 0, %s26
      %s29 = sphi 0, %s27
      %s45 = sphi 0, %s47
      %s48 = sphi 0, %s45
      %s49 = sphi 0, %s48
      %s65 = sphi 0, %s49
      %s77 = sphi 0, %s79
      %s80 = sphi 0, %s77
      %s81 = sphi 0, %s80
      %s97 = sphi 0, %s81
      %s103 = sphi 0, %s105
      %s106 = sphi 0, %s103
      %s107 = sphi 0, %s106
      %s123 = sphi 0, %s107
    $region4: #{tpu_custom_call.1} parent=1 // loop_header_branch
      %20 = sbr.rel (%p18) target = $region8
    $region5: #{tpu_custom_call.1} parent=1 // loop_body
      %s22 = ssub.s32 %s17, 1
      %s23 = ssub.s32 %s17, 2
      %s30 = sadd.s32 1, %s25
      %p31 = scmp.ge.s32.totalorder %s30, 1
      %s32 = scalar_select %p31, 0, %s30
      %s33 = sadd.s32 1, %s24
      %s34 = scalar_select %p31, %s33, %s24
      %p35 = scmp.ge.s32.totalorder %s34, 2
      %s36 = scalar_select %p35, 0, %s34
      %s37 = sadd.s32 %s24, %s25
      %p38 = scmp.lt.s32.totalorder %s37, 0
      %s39 = scalar_select %p38, %s37, 0
      %s40 = sadd.s32 %s36, %s32
      %p41 = scmp.lt.s32.totalorder %s40, 0
      %s42 = scalar_select %p41, %s40, 0
      %s43 = ssub.s32 %s39, %s42
      %p44 = scmp.eq.s32.totalorder %s43, 0
      %s46 = sadd.s32 %s45, 1
      %s47 = scalar_select %p44, %s45, %s46
      %p50 = pneg %p44
      %p51 = scmp.eq.s32.totalorder %s17, 1
      %p52 = por %p50, %p51
      %p53 = scmp.ne.s32.totalorder %s45, %s48
      %p54 = scmp.eq.s32.totalorder %s17, 0
      %p55 = por %p53, %p54
      %p56 = scmp.ne.s32.totalorder %s45, %s48
      %p57 = scmp.eq.s32.totalorder %s22, 1
      %p58 = por %p56, %p57
      %p59 = scmp.ne.s32.totalorder %s48, %s49
      %p60 = scmp.eq.s32.totalorder %s22, 0
      %p61 = por %p59, %p60
      %p62 = scmp.ne.s32.totalorder %s48, %s49
      %p63 = scmp.eq.s32.totalorder %s23, 1
      %p64 = por %p62, %p63
      %p66 = scmp.ne.s32.totalorder %s49, %s65
      %p67 = scmp.eq.s32.totalorder %s23, 0
      %p68 = por %p66, %p67
      %s69 = sadd.s32 %s24, %s25
      %p70 = scmp.lt.s32.totalorder %s69, 0
      %s71 = scalar_select %p70, %s69, 0
      %s72 = sadd.s32 %s36, %s32
      %p73 = scmp.lt.s32.totalorder %s72, 0
      %s74 = scalar_select %p73, %s72, 0
      %s75 = ssub.s32 %s71, %s74
      %p76 = scmp.eq.s32.totalorder %s75, 0
      %s78 = sadd.s32 %s77, 1
      %s79 = scalar_select %p76, %s77, %s78
      %p82 = pneg %p76
      %p83 = scmp.eq.s32.totalorder %s17, 1
      %p84 = por %p82, %p83
      %p85 = scmp.ne.s32.totalorder %s77, %s80
      %p86 = scmp.eq.s32.totalorder %s17, 0
      %p87 = por %p85, %p86
      %p88 = scmp.ne.s32.totalorder %s77, %s80
      %p89 = scmp.eq.s32.totalorder %s22, 1
      %p90 = por %p88, %p89
      %p91 = scmp.ne.s32.totalorder %s80, %s81
      %p92 = scmp.eq.s32.totalorder %s22, 0
      %p93 = por %p91, %p92
      %p94 = scmp.ne.s32.totalorder %s80, %s81
      %p95 = scmp.eq.s32.totalorder %s23, 1
      %p96 = por %p94, %p95
      %p98 = scmp.ne.s32.totalorder %s81, %s97
      %p99 = scmp.eq.s32.totalorder %s23, 0
      %p100 = por %p98, %p99
      %s101 = ssub.s32 %s24, %s36
      %p102 = scmp.eq.s32.totalorder %s101, 0
      %s104 = sadd.s32 %s103, 1
      %s105 = scalar_select %p102, %s103, %s104
      %p108 = pneg %p102
      %p109 = scmp.eq.s32.totalorder %s17, 1
      %p110 = por %p108, %p109
      %p111 = scmp.ne.s32.totalorder %s103, %s106
      %p112 = scmp.eq.s32.totalorder %s17, 0
      %p113 = por %p111, %p112
      %p114 = scmp.ne.s32.totalorder %s103, %s106
      %p115 = scmp.eq.s32.totalorder %s22, 1
      %p116 = por %p114, %p115
      %p117 = scmp.ne.s32.totalorder %s106, %s107
      %p118 = scmp.eq.s32.totalorder %s22, 0
      %p119 = por %p117, %p118
      %p120 = scmp.ne.s32.totalorder %s106, %s107
      %p121 = scmp.eq.s32.totalorder %s23, 1
      %p122 = por %p120, %p121
      %p124 = scmp.ne.s32.totalorder %s107, %s123
      %p125 = scmp.eq.s32.totalorder %s23, 0
      %p126 = por %p124, %p125
      %p127 = scmp.le.s32.totalorder 1, %s17
      %p128 = scmp.lt.s32.totalorder %s17, 3
      %p129 = pnand %p127, %p128
      %p130 = pneg %p129
      // Predicated region
      $region9: #{tpu_custom_call.1} parent=5 // pred_check
        _
      $region10: #{tpu_custom_call.1} parent=5 // pred_check_branch
        %132 = sbr.rel (%p129) target = $region12
      $region11: #{tpu_custom_call.1} parent=5 // pred_region
        %s133 = ssub.s32 %s17, 1
      $region12: #{tpu_custom_call.1} parent=5 // pred_fallthru
        _
      %p134 = scmp.lt.s32.totalorder %s17, 2
      // Predicated region
      $region13: #{tpu_custom_call.1} parent=5 // pred_check
        %p135 = pneg %p134
      $region14: #{tpu_custom_call.1} parent=5 // pred_check_branch
        %137 = sbr.rel (%p135) target = $region16
      $region15: #{tpu_custom_call.1} parent=5 // pred_region
        // Predicated region
        $region17: #{tpu_custom_call.1} parent=15 // pred_check
          %p138 = pneg %p55
        $region18: #{tpu_custom_call.1} parent=15 // pred_check_branch
          %140 = sbr.rel (%p138) target = $region20
        $region19: #{tpu_custom_call.1} parent=15 // pred_region
          %s141 = sand.u32 %s45, 1
          %s142 = scalar_lea.sflag [#allocation4], %s141
          %s143 = sand.u32 %s45, 1
          %s144 = smul.addr %s143, 16
          %s145 = scalar_lea.vmem [#allocation3], %s144
          %s146 = sadd.s32 %s24, %s25
          %p147 = scmp.lt.s32.totalorder %s146, 0
          %s148 = scalar_select %p147, %s146, 0
          %s149 = smul.u32 2, %s148
          %151 = vsyncadd %s142, 0
          %s152 = smul.addr %s149, 8
          %s153 = scalar_lea.hbm %s0, %s152
          %s154 = sshll.u32 %s153, 4
          %s155 = int_to_ptr.hbm [resolvable:$true] %s154
          %s156 = sshll.u32 %s145, 4
          %s157 = int_to_ptr.vmem [resolvable:$true] %s156
          %162 = dma.hbm_to_vmem [thread:$0]  %s155, 256, %s157, %s142, 128, 128, 8
        $region20: #{tpu_custom_call.1} parent=15 // pred_fallthru
          _
        // Predicated region
        $region21: #{tpu_custom_call.1} parent=15 // pred_check
          %p163 = pneg %p87
        $region22: #{tpu_custom_call.1} parent=15 // pred_check_branch
          %165 = sbr.rel (%p163) target = $region24
        $region23: #{tpu_custom_call.1} parent=15 // pred_region
          %s166 = sand.u32 %s77, 1
          %s167 = scalar_lea.sflag [#allocation7], %s166
          %s168 = sand.u32 %s77, 1
          %s169 = smul.addr %s168, 16
          %s170 = scalar_lea.vmem [#allocation6], %s169
          %s171 = sadd.s32 %s24, %s25
          %p172 = scmp.lt.s32.totalorder %s171, 0
          %s173 = scalar_select %p172, %s171, 0
          %s174 = smul.u32 2, %s173
          %176 = vsyncadd %s167, 0
          %s177 = smul.addr %s174, 8
          %s178 = scalar_lea.hbm %s1, %s177
          %s179 = sshll.u32 %s178, 4
          %s180 = int_to_ptr.hbm [resolvable:$true] %s179
          %s181 = sshll.u32 %s170, 4
          %s182 = int_to_ptr.vmem [resolvable:$true] %s181
          %187 = dma.hbm_to_vmem [thread:$0]  %s180, 256, %s182, %s167, 128, 128, 8
        $region24: #{tpu_custom_call.1} parent=15 // pred_fallthru
          _
      $region16: #{tpu_custom_call.1} parent=5 // pred_fallthru
        _
      %p188 = scmp.le.s32.totalorder 1, %s17
      %p189 = scmp.lt.s32.totalorder %s17, 3
      %p190 = pnand %p188, %p189
      %p191 = pneg %p190
      // Predicated region
      $region25: #{tpu_custom_call.1} parent=5 // pred_check
        _
      $region26: #{tpu_custom_call.1} parent=5 // pred_check_branch
        %193 = sbr.rel (%p190) target = $region28
      $region27: #{tpu_custom_call.1} parent=5 // pred_region
        %s194 = ssub.s32 %s17, 1
        %s195 = sand.u32 %s48, 1
        %s196 = scalar_lea.sflag [#allocation4], %s195
        %s197 = sand.u32 %s48, 1
        %s198 = smul.addr %s197, 16
        %s199 = scalar_lea.vmem [#allocation3], %s198
        // Predicated region
        $region29: #{tpu_custom_call.1} parent=27 // pred_check
          %p200 = pneg %p61
        $region30: #{tpu_custom_call.1} parent=27 // pred_check_branch
          %202 = sbr.rel (%p200) target = $region32
        $region31: #{tpu_custom_call.1} parent=27 // pred_region
          %204 = dma.done %s196, 256
        $region32: #{tpu_custom_call.1} parent=27 // pred_fallthru
          _
        %s205 = sand.u32 %s80, 1
        %s206 = scalar_lea.sflag [#allocation7], %s205
        %s207 = sand.u32 %s80, 1
        %s208 = smul.addr %s207, 16
        %s209 = scalar_lea.vmem [#allocation6], %s208
        // Predicated region
        $region33: #{tpu_custom_call.1} parent=27 // pred_check
          %p210 = pneg %p93
        $region34: #{tpu_custom_call.1} parent=27 // pred_check_branch
          %212 = sbr.rel (%p210) target = $region36
        $region35: #{tpu_custom_call.1} parent=27 // pred_region
          %214 = dma.done %s206, 256
        $region36: #{tpu_custom_call.1} parent=27 // pred_fallthru
          _
        %s215 = sand.u32 %s48, 1
        %s216 = scalar_lea.sflag [#allocation4], %s215
        %s217 = sand.u32 %s48, 1
        %s218 = smul.addr %s217, 16
        %s219 = scalar_lea.vmem [#allocation3], %s218
        %p220 = pneg %p61
        %p221 = pneg %p58
        %s222 = sand.u32 %s80, 1
        %s223 = scalar_lea.sflag [#allocation7], %s222
        %s224 = sand.u32 %s80, 1
        %s225 = smul.addr %s224, 16
        %s226 = scalar_lea.vmem [#allocation6], %s225
        %p227 = pneg %p93
        %p228 = pneg %p90
        %p229 = pneg %p119
        %p230 = pneg %p116
        %s231 = sand.u32 %s106, 1
        %s232 = scalar_lea.sflag [#allocation5], %s231
        %s233 = sand.u32 %s106, 1
        %s234 = smul.addr %s233, 8
        %s235 = scalar_lea.vmem [#allocation8], %s234
        %s236 = sadd.s32 %s26, %s27
        %p237 = scmp.lt.s32.totalorder %s236, 0
        %s238 = scalar_select %p237, %s236, 0
        %s239 = smul.u32 2, %s238
        %s240 = sadd.s32 %s26, %s27
        %p241 = scmp.lt.s32.totalorder %s240, 0
        %s242 = scalar_select %p241, %s240, 0
        %s243 = smul.u32 2, %s242
        %s244 = sadd.s32 %s26, %s27
        %p245 = scmp.eq.s32.totalorder %s27, 0
        // Predicated region
        $region37: #{tpu_custom_call.1} parent=27 // pred_check
          %p246 = pneg %p245
        $region38: #{tpu_custom_call.1} parent=27 // pred_check_branch
          %248 = sbr.rel (%p246) target = $region40
        $region39: #{tpu_custom_call.1} parent=27 // pred_region
          %249 = vst [vmem:[#allocation2] sm:$0xff] 0.0
          %250 = vst [vmem:[#allocation2 + $0x8] sm:$0xff] 0.0
        $region40: #{tpu_custom_call.1} parent=27 // pred_fallthru
          _
        %v251 = vld [vmem:[%s199] sm:$0xff]
        %v252 = vld [vmem:[%s199 + $0x8] sm:$0xff]
        %v253 = vld [vmem:[%s209] sm:$0xff]
        %v254 = vld [vmem:[%s209 + $0x8] sm:$0xff]
        %vm255 = vcmp.lt.f32.partialorder %v253, 0.0
        %vm256 = vcmp.lt.f32.partialorder %v254, 0.0
        %vm257 = vcmp.lt.f32.partialorder %v251, 0.0
        %vm258 = vcmp.lt.f32.partialorder %v252, 0.0
        %vm259 = vmand %vm255, %vm257
        %vm260 = vmand %vm256, %vm258
        %v261 = vmul.f32 %v253, 2.0
        %v262 = vmul.f32 %v254, 2.0
        %v263 = vsub.f32 %v251, %v261
        %v264 = vsub.f32 %v252, %v262
        %v265 = vsub.f32 0.0, %v251
        %v266 = vsub.f32 0.0, %v252
        %v267 = vsel %vm259, %v263, %v265
        %v268 = vsel %vm260, %v264, %v266
        %v269 = vmul.f32 %v267, %v267
        %v270 = vmul.f32 %v268, %v268
        %s271 = sadd.s32 %s244, 1
        %s272 = smul.u32 %s271, 16
        %p273 = scmp.le.s32.totalorder %s272, 16
        // Predicated region
        $region41: #{tpu_custom_call.1} parent=27 // pred_check
          %p274 = pneg %p273
        $region42: #{tpu_custom_call.1} parent=27 // pred_check_branch
          %276 = sbr.rel (%p274) target = $region44
        $region43: #{tpu_custom_call.1} parent=27 // pred_region
          %v277 = vld [vmem:[#allocation2] sm:$0xff]
          %v278 = vld [vmem:[#allocation2 + $0x8] sm:$0xff]
          %v279 = vadd.f32 %v277, %v269
          %v280 = vadd.f32 %v278, %v270
          %281 = vst [vmem:[#allocation2] sm:$0xff] %v279
          %282 = vst [vmem:[#allocation2 + $0x8] sm:$0xff] %v280
        $region44: #{tpu_custom_call.1} parent=27 // pred_fallthru
          _
        %p283 = scmp.gt.s32.totalorder %s272, 16
        // Predicated region
        $region45: #{tpu_custom_call.1} parent=27 // pred_check
          %p284 = pneg %p283
        $region46: #{tpu_custom_call.1} parent=27 // pred_check_branch
          %286 = sbr.rel (%p284) target = $region48
        $region47: #{tpu_custom_call.1} parent=27 // pred_region
          %v287 = vlaneseq
          %v288 = vshrl.u32 %v287, 7
          %v289 = vadd.s32 %v288, 8
          %s290 = smul.u32 %s244, 16
          %v291 = vstv %s290
          %v292 = vadd.s32 %v291, %v288
          %v293 = vadd.s32 %v291, %v289
          %vm294 = vcmp.lt.s32.totalorder %v292, 16
          %vm295 = vcmp.lt.s32.totalorder %v293, 16
          %v296 = vld [vmem:[#allocation2] sm:$0xff]
          %v297 = vld [vmem:[#allocation2 + $0x8] sm:$0xff]
          %v298 = vsel %vm294, %v269, 0.0
          %v299 = vsel %vm295, %v270, 0.0
          %v300 = vadd.f32 %v296, %v298
          %v301 = vadd.f32 %v297, %v299
          %302 = vst [vmem:[#allocation2] sm:$0xff] %v300
          %303 = vst [vmem:[#allocation2 + $0x8] sm:$0xff] %v301
        $region48: #{tpu_custom_call.1} parent=27 // pred_fallthru
          _
        // Predicated region
        $region49: #{tpu_custom_call.1} parent=27 // pred_check
          %p304 = pneg %p245
        $region50: #{tpu_custom_call.1} parent=27 // pred_check_branch
          %306 = sbr.rel (%p304) target = $region52
        $region51: #{tpu_custom_call.1} parent=27 // pred_region
          %v307 = vld [vmem:[#allocation2] sm:$0xff]
          %v308 = vld [vmem:[#allocation2 + $0x8] sm:$0xff]
          %v309 = vadd.f32 %v307, %v308
          %310 = vst [vmem:[%s235] sm:$0xff] %v309
        $region52: #{tpu_custom_call.1} parent=27 // pred_fallthru
          _
        %s311 = sand.u32 %s106, 1
        %s312 = scalar_lea.sflag [#allocation5], %s311
        %s313 = sand.u32 %s106, 1
        %s314 = smul.addr %s313, 8
        %s315 = scalar_lea.vmem [#allocation8], %s314
        // Predicated region
        $region53: #{tpu_custom_call.1} parent=27 // pred_check
          %p316 = pneg %p116
        $region54: #{tpu_custom_call.1} parent=27 // pred_check_branch
          %318 = sbr.rel (%p316) target = $region56
        $region55: #{tpu_custom_call.1} parent=27 // pred_region
          %320 = vsyncadd %s312, 0
          %s321 = smul.addr %s26, 8
          %s322 = scalar_lea.hbm %s2, %s321
          %s324 = sshll.u32 %s315, 4
          %s325 = int_to_ptr.vmem [resolvable:$true] %s324
          %s326 = sshll.u32 %s322, 4
          %s327 = int_to_ptr.hbm [resolvable:$true] %s326
          %329 = dma.vmem_to_hbm [thread:$0]  %s325, 128, %s327, %s312
        $region56: #{tpu_custom_call.1} parent=27 // pred_fallthru
          _
      $region28: #{tpu_custom_call.1} parent=5 // pred_fallthru
        _
      %p330 = scmp.le.s32.totalorder 2, %s17
      // Predicated region
      $region57: #{tpu_custom_call.1} parent=5 // pred_check
        %p331 = pneg %p330
      $region58: #{tpu_custom_call.1} parent=5 // pred_check_branch
        %333 = sbr.rel (%p331) target = $region60
      $region59: #{tpu_custom_call.1} parent=5 // pred_region
        %s334 = ssub.s32 %s17, 2
        // Predicated region
        $region61: #{tpu_custom_call.1} parent=59 // pred_check
          %p335 = pneg %p122
        $region62: #{tpu_custom_call.1} parent=59 // pred_check_branch
          %337 = sbr.rel (%p335) target = $region64
        $region63: #{tpu_custom_call.1} parent=59 // pred_region
          %s338 = sand.u32 %s107, 1
          %s339 = scalar_lea.sflag [#allocation5], %s338
          %s340 = sand.u32 %s107, 1
          %s341 = smul.addr %s340, 8
          %s342 = scalar_lea.vmem [#allocation8], %s341
          %344 = dma.done %s339, 128
        $region64: #{tpu_custom_call.1} parent=59 // pred_fallthru
          _
      $region60: #{tpu_custom_call.1} parent=5 // pred_fallthru
        _
    $region6: #{tpu_custom_call.1} parent=1 // loop_footer
      %s21 = sadd.s32 1, %s17
    $region7: #{tpu_custom_call.1} parent=1 // loop_footer_branch
      %16 = sbr.rel target = $region3
    $region8: #{tpu_custom_call.1} parent=1 // loop_exit
      _
    %345 = vsyncpa [#allocation4], 1
    %s346 = scalar_lea.sflag [#allocation4], 1
    %347 = vsyncpa %s346, 1
    %348 = vsyncpa [#allocation7], 1
    %s349 = scalar_lea.sflag [#allocation7], 1
    %350 = vsyncpa %s349, 1
    %351 = vsyncpa [#allocation5], 1
    %s352 = scalar_lea.sflag [#allocation5], 1
    %353 = vsyncpa %s352, 1

</llo_original>
